<compile_context>
chip_gen: v7x
topology: tpu7x:2x2x1
jax: 0.10.0
libtpu: 0.0.40
codegen_flags: <defaults>
</compile_context>

<pallas_src>
import jax
import jax.numpy as jnp
from jax.experimental import pallas as pl
from jax.experimental.pallas import tpu as pltpu


def _round_up(n, m):
    return ((n + m - 1) // m) * m


# ---------------------------------------------------------------------------
# Kernel: both critic heads on one batch tile (static unroll over heads).
# ---------------------------------------------------------------------------
def _critic_kernel(x_ref, u_ref,
                   w1x_ref, w1u_ref, b1_ref,
                   w2_ref, b2_ref,
                   w3_ref, b3_ref,
                   q_ref):
    x = x_ref[...]
    u = u_ref[...]
    for h in range(2):  # two critic heads, statically unrolled
        # layer 1: x @ W1x[h] + u @ W1u[h] + b1[h]   (concat of x,u avoided)
        a = (jnp.dot(x, w1x_ref[h], preferred_element_type=jnp.float32)
             + jnp.dot(u, w1u_ref[h], preferred_element_type=jnp.float32)
             + b1_ref[h])
        a = jnp.maximum(a, 0.0)
        # layer 2
        a = (jnp.dot(a.astype(w2_ref.dtype), w2_ref[h],
                     preferred_element_type=jnp.float32) + b2_ref[h])
        a = jnp.maximum(a, 0.0)
        # layer 3 -> scalar q for this head
        q = (jnp.dot(a.astype(w3_ref.dtype), w3_ref[h],
                     preferred_element_type=jnp.float32) + b3_ref[h])
        q_ref[:, h:h + 1] = q.astype(q_ref.dtype)


# ---------------------------------------------------------------------------
# Wrapper: batch-tiled pallas_call (no input padding, >=2 grid steps when
# possible so v7x's two TensorCores both get work).
# ---------------------------------------------------------------------------
def critic_forward(x, u, fused, *, tm=4096):
    """x: (B, state_dim), u: (B, action_dim); fused = fuse_params(...)."""
    B, state_dim = x.shape
    action_dim = u.shape[1]
    H = fused["w1x"].shape[2]

    # Tile selection: big tiles (amortize per-step overhead), but at least two
    # grid steps whenever the batch is >= 16 rows (dual-TC on v7x).  The tile
    # need not divide B: Pallas handles the partially-filled last block, so no
    # jnp.pad copy of x/u is ever made.
    b8 = _round_up(B, 8)
    n_steps = max(pl.cdiv(b8, tm), 2 if b8 >= 16 else 1)
    tile = _round_up(pl.cdiv(b8, n_steps), 8)
    n_steps = pl.cdiv(B, tile)

    const3 = lambda i: (0, 0, 0)  # weights/biases: same block every step (VMEM resident)

    q = pl.pallas_call(
        _critic_kernel,
        out_shape=jax.ShapeDtypeStruct((B, 2), jnp.float32),
        grid=(n_steps,),
        in_specs=[
            pl.BlockSpec((tile, state_dim), lambda i: (i, 0)),
            pl.BlockSpec((tile, action_dim), lambda i: (i, 0)),
            pl.BlockSpec((2, state_dim, H), const3),
            pl.BlockSpec((2, action_dim, H), const3),
            pl.BlockSpec((2, 1, H), const3),
            pl.BlockSpec((2, H, H), const3),
            pl.BlockSpec((2, 1, H), const3),
            pl.BlockSpec((2, H, 1), const3),
            pl.BlockSpec((2, 1, 1), const3),
        ],
        out_specs=pl.BlockSpec((tile, 2), lambda i: (i, 0)),
        compiler_params=pltpu.CompilerParams(
            dimension_semantics=("parallel",)),  # shards batch tiles across TCs on v7x
    )(x, u,
      fused["w1x"], fused["w1u"], fused["b1"],
      fused["w2"], fused["b2"],
      fused["w3"], fused["b3"])

    return q[:, 0:1], q[:, 1:2]


# ---------------------------------------------------------------------------
# Parameter handling.
# ---------------------------------------------------------------------------
def init_params(key, state_dim, action_dim, hidden_dim):
    """nn.Linear-style init; weights stored as (in, out), biases as (1, out)."""
    in_dim = state_dim + action_dim

    def linear(k, fan_in, fan_out):
        kw, kb = jax.random.split(k)
        bound = 1.0 / jnp.sqrt(jnp.float32(fan_in))
        w = jax.random.uniform(kw, (fan_in, fan_out), jnp.float32, -bound, bound)
        b = jax.random.uniform(kb, (1, fan_out), jnp.float32, -bound, bound)
        return w, b

    keys = jax.random.split(key, 6)
    cw1, cb1 = linear(keys[0], in_dim, hidden_dim)
    cw2, cb2 = linear(keys[1], hidden_dim, hidden_dim)
    cw3, cb3 = linear(keys[2], hidden_dim, 1)
    dw1, db1 = linear(keys[3], in_dim, hidden_dim)
    dw2, db2 = linear(keys[4], hidden_dim, hidden_dim)
    dw3, db3 = linear(keys[5], hidden_dim, 1)
    return dict(cw1=cw1, cb1=cb1, cw2=cw2, cb2=cb2, cw3=cw3, cb3=cb3,
                dw1=dw1, db1=db1, dw2=dw2, db2=db2, dw3=dw3, db3=db3)


def fuse_params(params, state_dim, *, weight_dtype=jnp.bfloat16):
    """Stack the two heads on a leading axis; weights optionally bf16, biases f32."""
    stack = lambda a, b: jnp.stack([a, b], axis=0)
    w1 = stack(params["cw1"], params["dw1"])                      # (2, in_dim, H)
    return dict(
        w1x=w1[:, :state_dim].astype(weight_dtype),               # (2, S, H)
        w1u=w1[:, state_dim:].astype(weight_dtype),               # (2, A, H)
        b1=stack(params["cb1"], params["db1"]).astype(jnp.float32),  # (2, 1, H)
        w2=stack(params["cw2"], params["dw2"]).astype(weight_dtype),  # (2, H, H)
        b2=stack(params["cb2"], params["db2"]).astype(jnp.float32),   # (2, 1, H)
        w3=stack(params["cw3"], params["dw3"]).astype(weight_dtype),  # (2, H, 1)
        b3=stack(params["cb3"], params["db3"]).astype(jnp.float32),   # (2, 1, 1)
    )


def critic_reference(x, u, params):
    """Pure-JAX f32 reference mirroring the PyTorch forward."""
    xu = jnp.concatenate([x, u], axis=1).astype(jnp.float32)
    h1 = jax.nn.relu(xu @ params["cw1"] + params["cb1"])
    h1 = jax.nn.relu(h1 @ params["cw2"] + params["cb2"])
    q1 = h1 @ params["cw3"] + params["cb3"]
    h2 = jax.nn.relu(xu @ params["dw1"] + params["db1"])
    h2 = jax.nn.relu(h2 @ params["dw2"] + params["db2"])
    q2 = h2 @ params["dw3"] + params["db3"]
    return q1, q2


if __name__ == "__main__":
    state_dim, action_dim, hidden_dim = 12, 4, 32
    key = jax.random.PRNGKey(0)
    kx, ku, kp = jax.random.split(key, 3)
    params = init_params(kp, state_dim, action_dim, hidden_dim)

    # --- exact f32 path: small batch, single grid step, tight tolerance -----
    fused_f32 = fuse_params(params, state_dim, weight_dtype=jnp.float32)
    batch = 8
    x = jax.random.normal(kx, (batch, state_dim), jnp.float32)
    u = jax.random.normal(ku, (batch, action_dim), jnp.float32)
    q1, q2 = critic_forward(x, u, fused_f32)
    q1, q2 = jax.block_until_ready(q1), jax.block_until_ready(q2)
    r1, r2 = critic_reference(x, u, params)
    assert q1.shape == (batch, 1) and q2.shape == (batch, 1)
    assert jnp.allclose(q1, r1, atol=1e-5, rtol=1e-5)
    assert jnp.allclose(q2, r2, atol=1e-5, rtol=1e-5)

    # --- bf16 fast path: ragged batch, multi-step grid, no padding ----------
    fused_bf16 = fuse_params(params, state_dim, weight_dtype=jnp.bfloat16)
    batch2 = 300
    kx2, ku2 = jax.random.split(jax.random.PRNGKey(1))
    x2 = jax.random.normal(kx2, (batch2, state_dim), jnp.float32)
    u2 = jax.random.normal(ku2, (batch2, action_dim), jnp.float32)
    p1, p2 = critic_forward(x2.astype(jnp.bfloat16), u2.astype(jnp.bfloat16),
                            fused_bf16, tm=128)
    p1, p2 = jax.block_until_ready(p1), jax.block_until_ready(p2)
    s1, s2 = critic_reference(x2, u2, params)
    assert p1.shape == (batch2, 1) and p2.shape == (batch2, 1)
    assert jnp.allclose(p1, s1, atol=3e-2, rtol=3e-2)  # bf16 weights/inputs
    assert jnp.allclose(p2, s2, atol=3e-2, rtol=3e-2)

    # --- small batch with default tm: still emits 2 grid steps (v7x) --------
    batch3 = 64
    kx3, ku3 = jax.random.split(jax.random.PRNGKey(2))
    x3 = jax.random.normal(kx3, (batch3, state_dim), jnp.float32)
    u3 = jax.random.normal(ku3, (batch3, action_dim), jnp.float32)
    t1, t2 = critic_forward(x3, u3, fused_f32)
    t1, t2 = jax.block_until_ready(t1), jax.block_until_ready(t2)
    v1, v2 = critic_reference(x3, u3, params)
    assert jnp.allclose(t1, v1, atol=1e-5, rtol=1e-5)
    assert jnp.allclose(t2, v2, atol=1e-5, rtol=1e-5)

    print("KERNEL_OK")
</pallas_src>

<mosaic_0001>
module attributes {stable_mosaic.version = 11 : i64} {
  func.func @_critic_kernel(%arg0: i32, %arg1: memref<8x12xf32, #tpu.memory_space<vmem>>, %arg2: memref<8x4xf32, #tpu.memory_space<vmem>>, %arg3: memref<2x12x32xf32, #tpu.memory_space<vmem>>, %arg4: memref<2x4x32xf32, #tpu.memory_space<vmem>>, %arg5: memref<2x1x32xf32, #tpu.memory_space<vmem>>, %arg6: memref<2x32x32xf32, #tpu.memory_space<vmem>>, %arg7: memref<2x1x32xf32, #tpu.memory_space<vmem>>, %arg8: memref<2x32x1xf32, #tpu.memory_space<vmem>>, %arg9: memref<2x1x1xf32, #tpu.memory_space<vmem>>, %arg10: memref<8x2xf32, #tpu.memory_space<vmem>>) attributes {dimension_semantics = [#tpu.dimension_semantics<parallel>], iteration_bounds = array<i64: 1>, scalar_prefetch = 0 : i64, scratch_operands = 0 : i64, tpu.core_type = #tpu.core_type<tc>, window_params = [{transform_indices = @transform_0, window_bounds = array<i64: 8, 12>}, {transform_indices = @transform_1, window_bounds = array<i64: 8, 4>}, {pipeline_mode = #tpu.pipeline_mode<synchronous>, transform_indices = @transform_2, window_bounds = array<i64: 2, 12, 32>}, {pipeline_mode = #tpu.pipeline_mode<synchronous>, transform_indices = @transform_3, window_bounds = array<i64: 2, 4, 32>}, {pipeline_mode = #tpu.pipeline_mode<synchronous>, transform_indices = @transform_4, window_bounds = array<i64: 2, 1, 32>}, {pipeline_mode = #tpu.pipeline_mode<synchronous>, transform_indices = @transform_5, window_bounds = array<i64: 2, 32, 32>}, {pipeline_mode = #tpu.pipeline_mode<synchronous>, transform_indices = @transform_6, window_bounds = array<i64: 2, 1, 32>}, {pipeline_mode = #tpu.pipeline_mode<synchronous>, transform_indices = @transform_7, window_bounds = array<i64: 2, 32, 1>}, {pipeline_mode = #tpu.pipeline_mode<synchronous>, transform_indices = @transform_8, window_bounds = array<i64: 2, 1, 1>}, {transform_indices = @transform_9, window_bounds = array<i64: 8, 2>}]} {
    %c0 = arith.constant 0 : index
    %c0_0 = arith.constant 0 : index
    %0 = vector.load %arg1[%c0, %c0_0] : memref<8x12xf32, #tpu.memory_space<vmem>>, vector<8x12xf32>
    %c0_1 = arith.constant 0 : index
    %c0_2 = arith.constant 0 : index
    %1 = vector.load %arg2[%c0_1, %c0_2] : memref<8x4xf32, #tpu.memory_space<vmem>>, vector<8x4xf32>
    %c0_3 = arith.constant 0 : index
    %c0_4 = arith.constant 0 : index
    %c0_5 = arith.constant 0 : index
    %2 = vector.load %arg3[%c0_3, %c0_4, %c0_5] : memref<2x12x32xf32, #tpu.memory_space<vmem>>, vector<1x12x32xf32>
    %3 = vector.shape_cast %2 : vector<1x12x32xf32> to vector<12x32xf32>
    %cst = arith.constant dense<0.000000e+00> : vector<8x32xf32>
    %4 = tpu.matmul %0, %3, %cst {dimension_numbers = #tpu.dot_dimension_numbers<[1], [0], [0], [1], [0, 0, 1, 1], [], []>} : vector<8x12xf32>, vector<12x32xf32>, vector<8x32xf32> -> vector<8x32xf32>
    %c0_6 = arith.constant 0 : index
    %c0_7 = arith.constant 0 : index
    %c0_8 = arith.constant 0 : index
    %5 = vector.load %arg4[%c0_6, %c0_7, %c0_8] : memref<2x4x32xf32, #tpu.memory_space<vmem>>, vector<1x4x32xf32>
    %6 = vector.shape_cast %5 : vector<1x4x32xf32> to vector<4x32xf32>
    %cst_9 = arith.constant dense<0.000000e+00> : vector<8x32xf32>
    %7 = tpu.matmul %1, %6, %cst_9 {dimension_numbers = #tpu.dot_dimension_numbers<[1], [0], [0], [1], [0, 0, 1, 1], [], []>} : vector<8x4xf32>, vector<4x32xf32>, vector<8x32xf32> -> vector<8x32xf32>
    %8 = arith.addf %4, %7 : vector<8x32xf32>
    %c0_10 = arith.constant 0 : index
    %c0_11 = arith.constant 0 : index
    %c0_12 = arith.constant 0 : index
    %9 = vector.load %arg5[%c0_10, %c0_11, %c0_12] : memref<2x1x32xf32, #tpu.memory_space<vmem>>, vector<1x1x32xf32>
    %10 = vector.shape_cast %9 : vector<1x1x32xf32> to vector<1x32xf32>
    %11 = vector.broadcast %10 : vector<1x32xf32> to vector<8x32xf32>
    %12 = arith.addf %8, %11 : vector<8x32xf32>
    %cst_13 = arith.constant 0.000000e+00 : f32
    %13 = vector.broadcast %cst_13 : f32 to vector<8x32xf32>
    %14 = arith.maximumf %12, %13 : vector<8x32xf32>
    %c0_14 = arith.constant 0 : index
    %c0_15 = arith.constant 0 : index
    %c0_16 = arith.constant 0 : index
    %15 = vector.load %arg6[%c0_14, %c0_15, %c0_16] : memref<2x32x32xf32, #tpu.memory_space<vmem>>, vector<1x32x32xf32>
    %16 = vector.shape_cast %15 : vector<1x32x32xf32> to vector<32x32xf32>
    %cst_17 = arith.constant dense<0.000000e+00> : vector<8x32xf32>
    %17 = tpu.matmul %14, %16, %cst_17 {dimension_numbers = #tpu.dot_dimension_numbers<[1], [0], [0], [1], [0, 0, 1, 1], [], []>} : vector<8x32xf32>, vector<32x32xf32>, vector<8x32xf32> -> vector<8x32xf32>
    %c0_18 = arith.constant 0 : index
    %c0_19 = arith.constant 0 : index
    %c0_20 = arith.constant 0 : index
    %18 = vector.load %arg7[%c0_18, %c0_19, %c0_20] : memref<2x1x32xf32, #tpu.memory_space<vmem>>, vector<1x1x32xf32>
    %19 = vector.shape_cast %18 : vector<1x1x32xf32> to vector<1x32xf32>
    %20 = vector.broadcast %19 : vector<1x32xf32> to vector<8x32xf32>
    %21 = arith.addf %17, %20 : vector<8x32xf32>
    %cst_21 = arith.constant 0.000000e+00 : f32
    %22 = vector.broadcast %cst_21 : f32 to vector<8x32xf32>
    %23 = arith.maximumf %21, %22 : vector<8x32xf32>
    %c0_22 = arith.constant 0 : index
    %c0_23 = arith.constant 0 : index
    %c0_24 = arith.constant 0 : index
    %24 = vector.load %arg8[%c0_22, %c0_23, %c0_24] : memref<2x32x1xf32, #tpu.memory_space<vmem>>, vector<1x32x1xf32>
    %25 = vector.shape_cast %24 : vector<1x32x1xf32> to vector<32x1xf32>
    %cst_25 = arith.constant dense<0.000000e+00> : vector<8x1xf32>
    %26 = tpu.matmul %23, %25, %cst_25 {dimension_numbers = #tpu.dot_dimension_numbers<[1], [0], [0], [1], [0, 0, 1, 1], [], []>} : vector<8x32xf32>, vector<32x1xf32>, vector<8x1xf32> -> vector<8x1xf32>
    %c0_26 = arith.constant 0 : index
    %c0_27 = arith.constant 0 : index
    %c0_28 = arith.constant 0 : index
    %27 = vector.load %arg9[%c0_26, %c0_27, %c0_28] : memref<2x1x1xf32, #tpu.memory_space<vmem>>, vector<1x1x1xf32>
    %28 = vector.shape_cast %27 : vector<1x1x1xf32> to vector<1x1xf32>
    %29 = vector.broadcast %28 : vector<1x1xf32> to vector<8x1xf32>
    %30 = arith.addf %26, %29 : vector<8x1xf32>
    %c0_29 = arith.constant 0 : index
    %c0_30 = arith.constant 0 : index
    %31 = vector.load %arg10[%c0_29, %c0_30] : memref<8x2xf32, #tpu.memory_space<vmem>>, vector<8x1xf32>
    tpu.vector_store %arg10[%c0_29, %c0_30], %30 {strides = array<i32>} : memref<8x2xf32, #tpu.memory_space<vmem>>, vector<8x1xf32>,
    %c1 = arith.constant 1 : index
    %c0_31 = arith.constant 0 : index
    %c0_32 = arith.constant 0 : index
    %32 = vector.load %arg3[%c1, %c0_31, %c0_32] : memref<2x12x32xf32, #tpu.memory_space<vmem>>, vector<1x12x32xf32>
    %33 = vector.shape_cast %32 : vector<1x12x32xf32> to vector<12x32xf32>
    %cst_33 = arith.constant dense<0.000000e+00> : vector<8x32xf32>
    %34 = tpu.matmul %0, %33, %cst_33 {dimension_numbers = #tpu.dot_dimension_numbers<[1], [0], [0], [1], [0, 0, 1, 1], [], []>} : vector<8x12xf32>, vector<12x32xf32>, vector<8x32xf32> -> vector<8x32xf32>
    %c1_34 = arith.constant 1 : index
    %c0_35 = arith.constant 0 : index
    %c0_36 = arith.constant 0 : index
    %35 = vector.load %arg4[%c1_34, %c0_35, %c0_36] : memref<2x4x32xf32, #tpu.memory_space<vmem>>, vector<1x4x32xf32>
    %36 = vector.shape_cast %35 : vector<1x4x32xf32> to vector<4x32xf32>
    %cst_37 = arith.constant dense<0.000000e+00> : vector<8x32xf32>
    %37 = tpu.matmul %1, %36, %cst_37 {dimension_numbers = #tpu.dot_dimension_numbers<[1], [0], [0], [1], [0, 0, 1, 1], [], []>} : vector<8x4xf32>, vector<4x32xf32>, vector<8x32xf32> -> vector<8x32xf32>
    %38 = arith.addf %34, %37 : vector<8x32xf32>
    %c1_38 = arith.constant 1 : index
    %c0_39 = arith.constant 0 : index
    %c0_40 = arith.constant 0 : index
    %39 = vector.load %arg5[%c1_38, %c0_39, %c0_40] : memref<2x1x32xf32, #tpu.memory_space<vmem>>, vector<1x1x32xf32>
    %40 = vector.shape_cast %39 : vector<1x1x32xf32> to vector<1x32xf32>
    %41 = vector.broadcast %40 : vector<1x32xf32> to vector<8x32xf32>
    %42 = arith.addf %38, %41 : vector<8x32xf32>
    %cst_41 = arith.constant 0.000000e+00 : f32
    %43 = vector.broadcast %cst_41 : f32 to vector<8x32xf32>
    %44 = arith.maximumf %42, %43 : vector<8x32xf32>
    %c1_42 = arith.constant 1 : index
    %c0_43 = arith.constant 0 : index
    %c0_44 = arith.constant 0 : index
    %45 = vector.load %arg6[%c1_42, %c0_43, %c0_44] : memref<2x32x32xf32, #tpu.memory_space<vmem>>, vector<1x32x32xf32>
    %46 = vector.shape_cast %45 : vector<1x32x32xf32> to vector<32x32xf32>
    %cst_45 = arith.constant dense<0.000000e+00> : vector<8x32xf32>
    %47 = tpu.matmul %44, %46, %cst_45 {dimension_numbers = #tpu.dot_dimension_numbers<[1], [0], [0], [1], [0, 0, 1, 1], [], []>} : vector<8x32xf32>, vector<32x32xf32>, vector<8x32xf32> -> vector<8x32xf32>
    %c1_46 = arith.constant 1 : index
    %c0_47 = arith.constant 0 : index
    %c0_48 = arith.constant 0 : index
    %48 = vector.load %arg7[%c1_46, %c0_47, %c0_48] : memref<2x1x32xf32, #tpu.memory_space<vmem>>, vector<1x1x32xf32>
    %49 = vector.shape_cast %48 : vector<1x1x32xf32> to vector<1x32xf32>
    %50 = vector.broadcast %49 : vector<1x32xf32> to vector<8x32xf32>
    %51 = arith.addf %47, %50 : vector<8x32xf32>
    %cst_49 = arith.constant 0.000000e+00 : f32
    %52 = vector.broadcast %cst_49 : f32 to vector<8x32xf32>
    %53 = arith.maximumf %51, %52 : vector<8x32xf32>
    %c1_50 = arith.constant 1 : index
    %c0_51 = arith.constant 0 : index
    %c0_52 = arith.constant 0 : index
    %54 = vector.load %arg8[%c1_50, %c0_51, %c0_52] : memref<2x32x1xf32, #tpu.memory_space<vmem>>, vector<1x32x1xf32>
    %55 = vector.shape_cast %54 : vector<1x32x1xf32> to vector<32x1xf32>
    %cst_53 = arith.constant dense<0.000000e+00> : vector<8x1xf32>
    %56 = tpu.matmul %53, %55, %cst_53 {dimension_numbers = #tpu.dot_dimension_numbers<[1], [0], [0], [1], [0, 0, 1, 1], [], []>} : vector<8x32xf32>, vector<32x1xf32>, vector<8x1xf32> -> vector<8x1xf32>
    %c1_54 = arith.constant 1 : index
    %c0_55 = arith.constant 0 : index
    %c0_56 = arith.constant 0 : index
    %57 = vector.load %arg9[%c1_54, %c0_55, %c0_56] : memref<2x1x1xf32, #tpu.memory_space<vmem>>, vector<1x1x1xf32>
    %58 = vector.shape_cast %57 : vector<1x1x1xf32> to vector<1x1xf32>
    %59 = vector.broadcast %58 : vector<1x1xf32> to vector<8x1xf32>
    %60 = arith.addf %56, %59 : vector<8x1xf32>
    %c0_57 = arith.constant 0 : index
    %c1_58 = arith.constant 1 : index
    %61 = vector.load %arg10[%c0_57, %c1_58] : memref<8x2xf32, #tpu.memory_space<vmem>>, vector<8x1xf32>
    tpu.vector_store %arg10[%c0_57, %c1_58], %60 {strides = array<i32>} : memref<8x2xf32, #tpu.memory_space<vmem>>, vector<8x1xf32>,
    return
  }
  func.func @transform_0(%arg0: i32) -> (i32, i32) {
    %c0_i32 = arith.constant 0 : i32
    %c0_i32_0 = arith.constant 0 : i32
    return %arg0, %c0_i32 : i32, i32
  }
  func.func @transform_1(%arg0: i32) -> (i32, i32) {
    %c0_i32 = arith.constant 0 : i32
    %c0_i32_0 = arith.constant 0 : i32
    return %arg0, %c0_i32 : i32, i32
  }
  func.func @transform_2(%arg0: i32) -> (i32, i32, i32) {
    %c0_i32 = arith.constant 0 : i32
    %c0_i32_0 = arith.constant 0 : i32
    %c0_i32_1 = arith.constant 0 : i32
    %c0_i32_2 = arith.constant 0 : i32
    return %c0_i32, %c0_i32_0, %c0_i32_1 : i32, i32, i32
  }
  func.func @transform_3(%arg0: i32) -> (i32, i32, i32) {
    %c0_i32 = arith.constant 0 : i32
    %c0_i32_0 = arith.constant 0 : i32
    %c0_i32_1 = arith.constant 0 : i32
    %c0_i32_2 = arith.constant 0 : i32
    return %c0_i32, %c0_i32_0, %c0_i32_1 : i32, i32, i32
  }
  func.func @transform_4(%arg0: i32) -> (i32, i32, i32) {
    %c0_i32 = arith.constant 0 : i32
    %c0_i32_0 = arith.constant 0 : i32
    %c0_i32_1 = arith.constant 0 : i32
    %c0_i32_2 = arith.constant 0 : i32
    return %c0_i32, %c0_i32_0, %c0_i32_1 : i32, i32, i32
  }
  func.func @transform_5(%arg0: i32) -> (i32, i32, i32) {
    %c0_i32 = arith.constant 0 : i32
    %c0_i32_0 = arith.constant 0 : i32
    %c0_i32_1 = arith.constant 0 : i32
    %c0_i32_2 = arith.constant 0 : i32
    return %c0_i32, %c0_i32_0, %c0_i32_1 : i32, i32, i32
  }
  func.func @transform_6(%arg0: i32) -> (i32, i32, i32) {
    %c0_i32 = arith.constant 0 : i32
    %c0_i32_0 = arith.constant 0 : i32
    %c0_i32_1 = arith.constant 0 : i32
    %c0_i32_2 = arith.constant 0 : i32
    return %c0_i32, %c0_i32_0, %c0_i32_1 : i32, i32, i32
  }
  func.func @transform_7(%arg0: i32) -> (i32, i32, i32) {
    %c0_i32 = arith.constant 0 : i32
    %c0_i32_0 = arith.constant 0 : i32
    %c0_i32_1 = arith.constant 0 : i32
    %c0_i32_2 = arith.constant 0 : i32
    return %c0_i32, %c0_i32_0, %c0_i32_1 : i32, i32, i32
  }
  func.func @transform_8(%arg0: i32) -> (i32, i32, i32) {
    %c0_i32 = arith.constant 0 : i32
    %c0_i32_0 = arith.constant 0 : i32
    %c0_i32_1 = arith.constant 0 : i32
    %c0_i32_2 = arith.constant 0 : i32
    return %c0_i32, %c0_i32_0, %c0_i32_1 : i32, i32, i32
  }
  func.func @transform_9(%arg0: i32) -> (i32, i32) {
    %c0_i32 = arith.constant 0 : i32
    %c0_i32_0 = arith.constant 0 : i32
    return %arg0, %c0_i32 : i32, i32
  }
}

</mosaic_0001>

<llo_original>
// kernel: tpu_custom_call.1
$region0: #{tpu_custom_call.1}
  #allocation0 [shape = 'u32[]', space=smem, size = 0x4, offset = 0x4, fixed_abs, tag = 'smem constant byte address 0x4 - core index']
  #allocation1 [shape = 'u32[144,128]{1,0:T(1,128)}', space=vmem, size = 0x12000, scoped, tag = 'internal scratch']
  %s0 = inlined_call_operand.vmem [shape: f32[8,12], index: 0, kind: input, shape index: {}]
  %s1 = inlined_call_operand.vmem [shape: f32[8,4], index: 1, kind: input, shape index: {}]
  %s2 = inlined_call_operand.vmem [shape: f32[2,12,32], index: 2, kind: input, shape index: {}]
  %s3 = inlined_call_operand.vmem [shape: f32[2,4,32], index: 3, kind: input, shape index: {}]
  %s4 = inlined_call_operand.vmem [shape: f32[2,1,32], index: 4, kind: input, shape index: {}]
  %s5 = inlined_call_operand.vmem [shape: f32[2,32,32], index: 5, kind: input, shape index: {}]
  %s6 = inlined_call_operand.vmem [shape: f32[2,1,32], index: 6, kind: input, shape index: {}]
  %s7 = inlined_call_operand.vmem [shape: f32[2,32,1], index: 7, kind: input, shape index: {}]
  %s8 = inlined_call_operand.vmem [shape: f32[2,1,1], index: 8, kind: input, shape index: {}]
  %s9 = inlined_call_operand.vmem [shape: f32[8,2], index: 9, kind: output, shape index: {}]
  %s10 = sld [smem:[#allocation0]]
  $region46: #{tpu_custom_call.1} parent=0
    _
  %s12 = ssub.s32 1, %s10
  %s13 = scalar_select 0, %s12, %s10
  // Predicated region
  $region2: #{tpu_custom_call.1} parent=0 // pred_check
    _
  $region3: #{tpu_custom_call.1} parent=0 // pred_check_branch
    %15 = sbr.rel (0) target = $region5
  $region4: #{tpu_custom_call.1} parent=0 // pred_region
    _
  $region5: #{tpu_custom_call.1} parent=0 // pred_fallthru
    _
  // Predicated region
  $region6: #{tpu_custom_call.1} parent=0 // pred_check
    _
  $region7: #{tpu_custom_call.1} parent=0 // pred_check_branch
    %17 = sbr.rel (0) target = $region9
  $region8: #{tpu_custom_call.1} parent=0 // pred_region
    _
  $region9: #{tpu_custom_call.1} parent=0 // pred_fallthru
    _
  // Predicated region
  $region10: #{tpu_custom_call.1} parent=0 // pred_check
    _
  $region11: #{tpu_custom_call.1} parent=0 // pred_check_branch
    %19 = sbr.rel (0) target = $region13
  $region12: #{tpu_custom_call.1} parent=0 // pred_region
    _
  $region13: #{tpu_custom_call.1} parent=0 // pred_fallthru
    _
  // Predicated region
  $region14: #{tpu_custom_call.1} parent=0 // pred_check
    _
  $region15: #{tpu_custom_call.1} parent=0 // pred_check_branch
    %21 = sbr.rel (0) target = $region17
  $region16: #{tpu_custom_call.1} parent=0 // pred_region
    _
  $region17: #{tpu_custom_call.1} parent=0 // pred_fallthru
    _
  // Predicated region
  $region18: #{tpu_custom_call.1} parent=0 // pred_check
    _
  $region19: #{tpu_custom_call.1} parent=0 // pred_check_branch
    %23 = sbr.rel (0) target = $region21
  $region20: #{tpu_custom_call.1} parent=0 // pred_region
    _
  $region21: #{tpu_custom_call.1} parent=0 // pred_fallthru
    _
  // Predicated region
  $region22: #{tpu_custom_call.1} parent=0 // pred_check
    _
  $region23: #{tpu_custom_call.1} parent=0 // pred_check_branch
    %25 = sbr.rel (0) target = $region25
  $region24: #{tpu_custom_call.1} parent=0 // pred_region
    _
  $region25: #{tpu_custom_call.1} parent=0 // pred_fallthru
    _
  // Predicated region
  $region26: #{tpu_custom_call.1} parent=0 // pred_check
    _
  $region27: #{tpu_custom_call.1} parent=0 // pred_check_branch
    %27 = sbr.rel (0) target = $region29
  $region28: #{tpu_custom_call.1} parent=0 // pred_region
    _
  $region29: #{tpu_custom_call.1} parent=0 // pred_fallthru
    _
  // Predicated region
  $region30: #{tpu_custom_call.1} parent=0 // pred_check
    _
  $region31: #{tpu_custom_call.1} parent=0 // pred_check_branch
    %29 = sbr.rel (0) target = $region33
  $region32: #{tpu_custom_call.1} parent=0 // pred_region
    _
  $region33: #{tpu_custom_call.1} parent=0 // pred_fallthru
    _
  // Predicated region
  $region34: #{tpu_custom_call.1} parent=0 // pred_check
    _
  $region35: #{tpu_custom_call.1} parent=0 // pred_check_branch
    %31 = sbr.rel (0) target = $region37
  $region36: #{tpu_custom_call.1} parent=0 // pred_region
    _
  $region37: #{tpu_custom_call.1} parent=0 // pred_fallthru
    _
  %v32 = vld [vmem:[%s0] sm:$0xff]
  %v33 = vld [vmem:[%s1] sm:$0xff]
  %v34 = vld [vmem:[%s2] sm:$0xff]
  %v35 = vld [vmem:[%s2 + $0x8] sm:$0xf]
  %v36 = vld [vmem:[%s3] sm:$0xf]
  %vm37 = vcmask 31744
  %v39 = vsel %vm37, %v33, 0
  %vm41 = vcmask 1043456
  %v43 = vsel %vm41, %v36, 0
  %45 = vmatprep.subr.mxu0 0.0
  %46 = vmatpush1.msra.mxu0 %v43
  %47 = vmatprep.subr.mxu0 0.0
  %48 = vmatpush1.msra.mxu0 0.0
  %49 = vmatprep.subr.mxu0 0.0
  %50 = vmatpush1.msra.mxu0 0.0
  %51 = vmatprep.subr.mxu0 0.0
  %52 = vmatpush1.msra.mxu0 0.0
  %53 = vmatprep.subr.mxu0 0.0
  %54 = vmatpush1.msra.mxu0 0.0
  %55 = vmatprep.subr.mxu0 0.0
  %56 = vmatpush1.msra.mxu0 0.0
  %57 = vmatprep.subr.mxu0 0.0
  %58 = vmatpush1.msra.mxu0 0.0
  %59 = vmatprep.subr.mxu0 0.0
  %60 = vmatpush1.msra.mxu0 0.0
  %61 = vmatprep.subr.mxu0 0.0
  %62 = vmatpush1.msra.mxu0 0.0
  %63 = vmatprep.subr.mxu0 0.0
  %64 = vmatpush1.msra.mxu0 0.0
  %65 = vmatprep.subr.mxu0 0.0
  %66 = vmatpush1.msra.mxu0 0.0
  %67 = vmatprep.subr.mxu0 0.0
  %68 = vmatpush1.msra.mxu0 0.0
  %69 = vmatprep.subr.mxu0 0.0
  %70 = vmatpush1.msra.mxu0 0.0
  %71 = vmatprep.subr.mxu0 0.0
  %72 = vmatpush1.msra.mxu0 0.0
  %73 = vmatprep.subr.mxu0 0.0
  %74 = vmatpush1.msra.mxu0 0.0
  %75 = vmatprep.subr.mxu0 0.0
  %76 = vmatpush1.msra.mxu0 0.0
  %77 = vmatprep.subr.mxu0 0.0
  %78 = vmatpush1.msra.mxu0 0.0
  %79 = vmatprep.subr.mxu0 0.0
  %80 = vmatpush1.msra.mxu0 0.0
  %81 = vmatprep.subr.mxu0 0.0
  %82 = vmatpush1.msra.mxu0 0.0
  %83 = vmatprep.subr.mxu0 0.0
  %84 = vmatpush1.msra.mxu0 0.0
  %85 = vmatprep.subr.mxu0 0.0
  %86 = vmatpush1.msra.mxu0 0.0
  %87 = vmatprep.subr.mxu0 0.0
  %88 = vmatpush1.msra.mxu0 0.0
  %89 = vmatprep.subr.mxu0 0.0
  %90 = vmatpush1.msra.mxu0 0.0
  %91 = vmatprep.subr.mxu0 0.0
  %92 = vmatpush1.msra.mxu0 0.0
  %93 = vmatprep.subr.mxu0 0.0
  %94 = vmatpush1.msra.mxu0 0.0
  %95 = vmatprep.subr.mxu0 0.0
  %96 = vmatpush1.msra.mxu0 0.0
  %97 = vmatprep.subr.mxu0 0.0
  %98 = vmatpush1.msra.mxu0 0.0
  %99 = vmatprep.subr.mxu0 0.0
  %100 = vmatpush1.msra.mxu0 0.0
  %101 = vmatprep.subr.mxu0 0.0
  %102 = vmatpush1.msra.mxu0 0.0
  %103 = vmatprep.subr.mxu0 0.0
  %104 = vmatpush1.msra.mxu0 0.0
  %105 = vmatprep.subr.mxu0 0.0
  %106 = vmatpush1.msra.mxu0 0.0
  %107 = vmatprep.subr.mxu0 0.0
  %108 = vmatpush1.msra.mxu0 0.0
  %109 = vmatprep.mubr.f32.mxu0 0.0
  %110 = vmatmul.mubr.f32.gmra.mrb[0].mxu0 %v39
  %v111 = vpop.f32.mrb[0].mxu0
  %v112 = vadd.f32 0.0, %v111
  %v113 = vpop.f32.mrb[0].mxu0
  %114 = vdwg.mxu0
  %vm115 = vcmask 97280
  %v117 = vsel %vm115, %v32, 0
  %v120 = vsel %vm41, %v35, 0
  %122 = vmatprep.subr.mxu0 0.0
  %123 = vmatpush1.msra.mxu0 %v34
  %124 = vmatprep.subr.mxu0 0.0
  %125 = vmatpush1.msra.mxu0 %v120
  %126 = vmatprep.subr.mxu0 0.0
  %127 = vmatpush1.msra.mxu0 0.0
  %128 = vmatprep.subr.mxu0 0.0
  %129 = vmatpush1.msra.mxu0 0.0
  %130 = vmatprep.subr.mxu0 0.0
  %131 = vmatpush1.msra.mxu0 0.0
  %132 = vmatprep.subr.mxu0 0.0
  %133 = vmatpush1.msra.mxu0 0.0
  %134 = vmatprep.subr.mxu0 0.0
  %135 = vmatpush1.msra.mxu0 0.0
  %136 = vmatprep.subr.mxu0 0.0
  %137 = vmatpush1.msra.mxu0 0.0
  %138 = vmatprep.subr.mxu0 0.0
  %139 = vmatpush1.msra.mxu0 0.0
  %140 = vmatprep.subr.mxu0 0.0
  %141 = vmatpush1.msra.mxu0 0.0
  %142 = vmatprep.subr.mxu0 0.0
  %143 = vmatpush1.msra.mxu0 0.0
  %144 = vmatprep.subr.mxu0 0.0
  %145 = vmatpush1.msra.mxu0 0.0
  %146 = vmatprep.subr.mxu0 0.0
  %147 = vmatpush1.msra.mxu0 0.0
  %148 = vmatprep.subr.mxu0 0.0
  %149 = vmatpush1.msra.mxu0 0.0
  %150 = vmatprep.subr.mxu0 0.0
  %151 = vmatpush1.msra.mxu0 0.0
  %152 = vmatprep.subr.mxu0 0.0
  %153 = vmatpush1.msra.mxu0 0.0
  %154 = vmatprep.subr.mxu0 0.0
  %155 = vmatpush1.msra.mxu0 0.0
  %156 = vmatprep.subr.mxu0 0.0
  %157 = vmatpush1.msra.mxu0 0.0
  %158 = vmatprep.subr.mxu0 0.0
  %159 = vmatpush1.msra.mxu0 0.0
  %160 = vmatprep.subr.mxu0 0.0
  %161 = vmatpush1.msra.mxu0 0.0
  %162 = vmatprep.subr.mxu0 0.0
  %163 = vmatpush1.msra.mxu0 0.0
  %164 = vmatprep.subr.mxu0 0.0
  %165 = vmatpush1.msra.mxu0 0.0
  %166 = vmatprep.subr.mxu0 0.0
  %167 = vmatpush1.msra.mxu0 0.0
  %168 = vmatprep.subr.mxu0 0.0
  %169 = vmatpush1.msra.mxu0 0.0
  %170 = vmatprep.subr.mxu0 0.0
  %171 = vmatpush1.msra.mxu0 0.0
  %172 = vmatprep.subr.mxu0 0.0
  %173 = vmatpush1.msra.mxu0 0.0
  %174 = vmatprep.subr.mxu0 0.0
  %175 = vmatpush1.msra.mxu0 0.0
  %176 = vmatprep.subr.mxu0 0.0
  %177 = vmatpush1.msra.mxu0 0.0
  %178 = vmatprep.subr.mxu0 0.0
  %179 = vmatpush1.msra.mxu0 0.0
  %180 = vmatprep.subr.mxu0 0.0
  %181 = vmatpush1.msra.mxu0 0.0
  %182 = vmatprep.subr.mxu0 0.0
  %183 = vmatpush1.msra.mxu0 0.0
  %184 = vmatprep.subr.mxu0 0.0
  %185 = vmatpush1.msra.mxu0 0.0
  %186 = vmatprep.mubr.f32.mxu0 0.0
  %187 = vmatmul.mubr.f32.gmra.mrb[0].mxu0 %v117
  %v188 = vpop.f32.mrb[0].mxu0
  %v189 = vadd.f32 %v112, %v188
  %v190 = vpop.f32.mrb[0].mxu0
  %191 = vdwg.mxu0
  %v192 = vld [vmem:[%s4] sm:$0x1]
  %v194 = vlaneseq
  %v195 = vshrl.u32 %v194, 7
  %v196 = vsub.s32 0, %v195
  %v197 = vrot.slane %v192, %v196
  %v199 = vadd.f32 %v189, %v197
  %v200 = vmax.f32 %v199, 0.0
  %v201 = vld [vmem:[%s5] sm:$0xff]
  %v202 = vld [vmem:[%s5 + $0x8] sm:$0xff]
  %v203 = vld [vmem:[%s5 + $0x10] sm:$0xff]
  %v204 = vld [vmem:[%s5 + $0x18] sm:$0xff]
  %v205 = vld [vmem:[%s6] sm:$0x1]
  %v207 = vlaneseq
  %v208 = vshrl.u32 %v207, 7
  %v209 = vsub.s32 0, %v208
  %v210 = vrot.slane %v205, %v209
  %vm212 = vcmask 261120
  %v214 = vsel %vm212, %v200, 0
  %216 = vmatprep.subr.mxu0 0.0
  %217 = vmatpush1.msra.mxu0 %v201
  %218 = vmatprep.subr.mxu0 0.0
  %219 = vmatpush1.msra.mxu0 %v202
  %220 = vmatprep.subr.mxu0 0.0
  %221 = vmatpush1.msra.mxu0 %v203
  %222 = vmatprep.subr.mxu0 0.0
  %223 = vmatpush1.msra.mxu0 %v204
  %224 = vmatprep.subr.mxu0 0.0
  %225 = vmatpush1.msra.mxu0 0.0
  %226 = vmatprep.subr.mxu0 0.0
  %227 = vmatpush1.msra.mxu0 0.0
  %228 = vmatprep.subr.mxu0 0.0
  %229 = vmatpush1.msra.mxu0 0.0
  %230 = vmatprep.subr.mxu0 0.0
  %231 = vmatpush1.msra.mxu0 0.0
  %232 = vmatprep.subr.mxu0 0.0
  %233 = vmatpush1.msra.mxu0 0.0
  %234 = vmatprep.subr.mxu0 0.0
  %235 = vmatpush1.msra.mxu0 0.0
  %236 = vmatprep.subr.mxu0 0.0
  %237 = vmatpush1.msra.mxu0 0.0
  %238 = vmatprep.subr.mxu0 0.0
  %239 = vmatpush1.msra.mxu0 0.0
  %240 = vmatprep.subr.mxu0 0.0
  %241 = vmatpush1.msra.mxu0 0.0
  %242 = vmatprep.subr.mxu0 0.0
  %243 = vmatpush1.msra.mxu0 0.0
  %244 = vmatprep.subr.mxu0 0.0
  %245 = vmatpush1.msra.mxu0 0.0
  %246 = vmatprep.subr.mxu0 0.0
  %247 = vmatpush1.msra.mxu0 0.0
  %248 = vmatprep.subr.mxu0 0.0
  %249 = vmatpush1.msra.mxu0 0.0
  %250 = vmatprep.subr.mxu0 0.0
  %251 = vmatpush1.msra.mxu0 0.0
  %252 = vmatprep.subr.mxu0 0.0
  %253 = vmatpush1.msra.mxu0 0.0
  %254 = vmatprep.subr.mxu0 0.0
  %255 = vmatpush1.msra.mxu0 0.0
  %256 = vmatprep.subr.mxu0 0.0
  %257 = vmatpush1.msra.mxu0 0.0
  %258 = vmatprep.subr.mxu0 0.0
  %259 = vmatpush1.msra.mxu0 0.0
  %260 = vmatprep.subr.mxu0 0.0
  %261 = vmatpush1.msra.mxu0 0.0
  %262 = vmatprep.subr.mxu0 0.0
  %263 = vmatpush1.msra.mxu0 0.0
  %264 = vmatprep.subr.mxu0 0.0
  %265 = vmatpush1.msra.mxu0 0.0
  %266 = vmatprep.subr.mxu0 0.0
  %267 = vmatpush1.msra.mxu0 0.0
  %268 = vmatprep.subr.mxu0 0.0
  %269 = vmatpush1.msra.mxu0 0.0
  %270 = vmatprep.subr.mxu0 0.0
  %271 = vmatpush1.msra.mxu0 0.0
  %272 = vmatprep.subr.mxu0 0.0
  %273 = vmatpush1.msra.mxu0 0.0
  %274 = vmatprep.subr.mxu0 0.0
  %275 = vmatpush1.msra.mxu0 0.0
  %276 = vmatprep.subr.mxu0 0.0
  %277 = vmatpush1.msra.mxu0 0.0
  %278 = vmatprep.subr.mxu0 0.0
  %279 = vmatpush1.msra.mxu0 0.0
  %280 = vmatprep.mubr.f32.mxu0 0.0
  %281 = vmatmul.mubr.f32.gmra.mrb[0].mxu0 %v214
  %v282 = vpop.f32.mrb[0].mxu0
  %v283 = vadd.f32 %v210, %v282
  %v284 = vpop.f32.mrb[0].mxu0
  %285 = vdwg.mxu0
  %v286 = vmax.f32 %v283, 0.0
  %v287 = vld [vmem:[%s7] sm:$0xff]
  %v288 = vld [vmem:[%s7 + $0x8] sm:$0xff]
  %v289 = vld [vmem:[%s7 + $0x10] sm:$0xff]
  %v290 = vld [vmem:[%s7 + $0x18] sm:$0xff]
  %v291 = vld [vmem:[%s8] sm:$0x1]
  %v293 = vlaneseq
  %v294 = vshrl.u32 %v293, 7
  %v295 = vsub.s32 0, %v294
  %v296 = vrot.slane %v291, %v295
  %v299 = vsel %vm212, %v286, 0
  %301 = vmatprep.subr.mxu0 0.0
  %302 = vmatpush1.msra.mxu0 %v287
  %303 = vmatprep.subr.mxu0 0.0
  %304 = vmatpush1.msra.mxu0 %v288
  %305 = vmatprep.subr.mxu0 0.0
  %306 = vmatpush1.msra.mxu0 %v289
  %307 = vmatprep.subr.mxu0 0.0
  %308 = vmatpush1.msra.mxu0 %v290
  %309 = vmatprep.subr.mxu0 0.0
  %310 = vmatpush1.msra.mxu0 0.0
  %311 = vmatprep.subr.mxu0 0.0
  %312 = vmatpush1.msra.mxu0 0.0
  %313 = vmatprep.subr.mxu0 0.0
  %314 = vmatpush1.msra.mxu0 0.0
  %315 = vmatprep.subr.mxu0 0.0
  %316 = vmatpush1.msra.mxu0 0.0
  %317 = vmatprep.subr.mxu0 0.0
  %318 = vmatpush1.msra.mxu0 0.0
  %319 = vmatprep.subr.mxu0 0.0
  %320 = vmatpush1.msra.mxu0 0.0
  %321 = vmatprep.subr.mxu0 0.0
  %322 = vmatpush1.msra.mxu0 0.0
  %323 = vmatprep.subr.mxu0 0.0
  %324 = vmatpush1.msra.mxu0 0.0
  %325 = vmatprep.subr.mxu0 0.0
  %326 = vmatpush1.msra.mxu0 0.0
  %327 = vmatprep.subr.mxu0 0.0
  %328 = vmatpush1.msra.mxu0 0.0
  %329 = vmatprep.subr.mxu0 0.0
  %330 = vmatpush1.msra.mxu0 0.0
  %331 = vmatprep.subr.mxu0 0.0
  %332 = vmatpush1.msra.mxu0 0.0
  %333 = vmatprep.subr.mxu0 0.0
  %334 = vmatpush1.msra.mxu0 0.0
  %335 = vmatprep.subr.mxu0 0.0
  %336 = vmatpush1.msra.mxu0 0.0
  %337 = vmatprep.subr.mxu0 0.0
  %338 = vmatpush1.msra.mxu0 0.0
  %339 = vmatprep.subr.mxu0 0.0
  %340 = vmatpush1.msra.mxu0 0.0
  %341 = vmatprep.subr.mxu0 0.0
  %342 = vmatpush1.msra.mxu0 0.0
  %343 = vmatprep.subr.mxu0 0.0
  %344 = vmatpush1.msra.mxu0 0.0
  %345 = vmatprep.subr.mxu0 0.0
  %346 = vmatpush1.msra.mxu0 0.0
  %347 = vmatprep.subr.mxu0 0.0
  %348 = vmatpush1.msra.mxu0 0.0
  %349 = vmatprep.subr.mxu0 0.0
  %350 = vmatpush1.msra.mxu0 0.0
  %351 = vmatprep.subr.mxu0 0.0
  %352 = vmatpush1.msra.mxu0 0.0
  %353 = vmatprep.subr.mxu0 0.0
  %354 = vmatpush1.msra.mxu0 0.0
  %355 = vmatprep.subr.mxu0 0.0
  %356 = vmatpush1.msra.mxu0 0.0
  %357 = vmatprep.subr.mxu0 0.0
  %358 = vmatpush1.msra.mxu0 0.0
  %359 = vmatprep.subr.mxu0 0.0
  %360 = vmatpush1.msra.mxu0 0.0
  %361 = vmatprep.subr.mxu0 0.0
  %362 = vmatpush1.msra.mxu0 0.0
  %363 = vmatprep.subr.mxu0 0.0
  %364 = vmatpush1.msra.mxu0 0.0
  %365 = vmatprep.mubr.f32.mxu0 0.0
  %366 = vmatmul.mubr.f32.gmra.mrb[0].mxu0 %v299
  %v367 = vpop.f32.mrb[0].mxu0
  %v368 = vadd.f32 %v296, %v367
  %v369 = vpop.f32.mrb[0].mxu0
  %370 = vdwg.mxu0
  %vm371 = vcmask 7168
  %372 = vst.msk [vmem:[%s9] sm:$0xff] %vm371, %v368
  %s373 = scalar_lea.vmem %s2, 16
  %v374 = vld [vmem:[%s373] sm:$0xff]
  %v375 = vld [vmem:[%s373 + $0x8] sm:$0xf]
  %s376 = scalar_lea.vmem %s3, 4
  %v377 = vld [vmem:[%s376] sm:$0xf]
  %v379 = vsel %vm41, %v377, 0
  %381 = vmatprep.subr.mxu0 0.0
  %382 = vmatpush1.msra.mxu0 %v379
  %383 = vmatprep.subr.mxu0 0.0
  %384 = vmatpush1.msra.mxu0 0.0
  %385 = vmatprep.subr.mxu0 0.0
  %386 = vmatpush1.msra.mxu0 0.0
  %387 = vmatprep.subr.mxu0 0.0
  %388 = vmatpush1.msra.mxu0 0.0
  %389 = vmatprep.subr.mxu0 0.0
  %390 = vmatpush1.msra.mxu0 0.0
  %391 = vmatprep.subr.mxu0 0.0
  %392 = vmatpush1.msra.mxu0 0.0
  %393 = vmatprep.subr.mxu0 0.0
  %394 = vmatpush1.msra.mxu0 0.0
  %395 = vmatprep.subr.mxu0 0.0
  %396 = vmatpush1.msra.mxu0 0.0
  %397 = vmatprep.subr.mxu0 0.0
  %398 = vmatpush1.msra.mxu0 0.0
  %399 = vmatprep.subr.mxu0 0.0
  %400 = vmatpush1.msra.mxu0 0.0
  %401 = vmatprep.subr.mxu0 0.0
  %402 = vmatpush1.msra.mxu0 0.0
  %403 = vmatprep.subr.mxu0 0.0
  %404 = vmatpush1.msra.mxu0 0.0
  %405 = vmatprep.subr.mxu0 0.0
  %406 = vmatpush1.msra.mxu0 0.0
  %407 = vmatprep.subr.mxu0 0.0
  %408 = vmatpush1.msra.mxu0 0.0
  %409 = vmatprep.subr.mxu0 0.0
  %410 = vmatpush1.msra.mxu0 0.0
  %411 = vmatprep.subr.mxu0 0.0
  %412 = vmatpush1.msra.mxu0 0.0
  %413 = vmatprep.subr.mxu0 0.0
  %414 = vmatpush1.msra.mxu0 0.0
  %415 = vmatprep.subr.mxu0 0.0
  %416 = vmatpush1.msra.mxu0 0.0
  %417 = vmatprep.subr.mxu0 0.0
  %418 = vmatpush1.msra.mxu0 0.0
  %419 = vmatprep.subr.mxu0 0.0
  %420 = vmatpush1.msra.mxu0 0.0
  %421 = vmatprep.subr.mxu0 0.0
  %422 = vmatpush1.msra.mxu0 0.0
  %423 = vmatprep.subr.mxu0 0.0
  %424 = vmatpush1.msra.mxu0 0.0
  %425 = vmatprep.subr.mxu0 0.0
  %426 = vmatpush1.msra.mxu0 0.0
  %427 = vmatprep.subr.mxu0 0.0
  %428 = vmatpush1.msra.mxu0 0.0
  %429 = vmatprep.subr.mxu0 0.0
  %430 = vmatpush1.msra.mxu0 0.0
  %431 = vmatprep.subr.mxu0 0.0
  %432 = vmatpush1.msra.mxu0 0.0
  %433 = vmatprep.subr.mxu0 0.0
  %434 = vmatpush1.msra.mxu0 0.0
  %435 = vmatprep.subr.mxu0 0.0
  %436 = vmatpush1.msra.mxu0 0.0
  %437 = vmatprep.subr.mxu0 0.0
  %438 = vmatpush1.msra.mxu0 0.0
  %439 = vmatprep.subr.mxu0 0.0
  %440 = vmatpush1.msra.mxu0 0.0
  %441 = vmatprep.subr.mxu0 0.0
  %442 = vmatpush1.msra.mxu0 0.0
  %443 = vmatprep.subr.mxu0 0.0
  %444 = vmatpush1.msra.mxu0 0.0
  %445 = vmatprep.mubr.f32.mxu0 0.0
  %446 = vmatmul.mubr.f32.gmra.mrb[0].mxu0 %v39
  %v447 = vpop.f32.mrb[0].mxu0
  %v448 = vadd.f32 0.0, %v447
  %v449 = vpop.f32.mrb[0].mxu0
  %450 = vdwg.mxu0
  %v452 = vsel %vm41, %v375, 0
  %454 = vmatprep.subr.mxu0 0.0
  %455 = vmatpush1.msra.mxu0 %v374
  %456 = vmatprep.subr.mxu0 0.0
  %457 = vmatpush1.msra.mxu0 %v452
  %458 = vmatprep.subr.mxu0 0.0
  %459 = vmatpush1.msra.mxu0 0.0
  %460 = vmatprep.subr.mxu0 0.0
  %461 = vmatpush1.msra.mxu0 0.0
  %462 = vmatprep.subr.mxu0 0.0
  %463 = vmatpush1.msra.mxu0 0.0
  %464 = vmatprep.subr.mxu0 0.0
  %465 = vmatpush1.msra.mxu0 0.0
  %466 = vmatprep.subr.mxu0 0.0
  %467 = vmatpush1.msra.mxu0 0.0
  %468 = vmatprep.subr.mxu0 0.0
  %469 = vmatpush1.msra.mxu0 0.0
  %470 = vmatprep.subr.mxu0 0.0
  %471 = vmatpush1.msra.mxu0 0.0
  %472 = vmatprep.subr.mxu0 0.0
  %473 = vmatpush1.msra.mxu0 0.0
  %474 = vmatprep.subr.mxu0 0.0
  %475 = vmatpush1.msra.mxu0 0.0
  %476 = vmatprep.subr.mxu0 0.0
  %477 = vmatpush1.msra.mxu0 0.0
  %478 = vmatprep.subr.mxu0 0.0
  %479 = vmatpush1.msra.mxu0 0.0
  %480 = vmatprep.subr.mxu0 0.0
  %481 = vmatpush1.msra.mxu0 0.0
  %482 = vmatprep.subr.mxu0 0.0
  %483 = vmatpush1.msra.mxu0 0.0
  %484 = vmatprep.subr.mxu0 0.0
  %485 = vmatpush1.msra.mxu0 0.0
  %486 = vmatprep.subr.mxu0 0.0
  %487 = vmatpush1.msra.mxu0 0.0
  %488 = vmatprep.subr.mxu0 0.0
  %489 = vmatpush1.msra.mxu0 0.0
  %490 = vmatprep.subr.mxu0 0.0
  %491 = vmatpush1.msra.mxu0 0.0
  %492 = vmatprep.subr.mxu0 0.0
  %493 = vmatpush1.msra.mxu0 0.0
  %494 = vmatprep.subr.mxu0 0.0
  %495 = vmatpush1.msra.mxu0 0.0
  %496 = vmatprep.subr.mxu0 0.0
  %497 = vmatpush1.msra.mxu0 0.0
  %498 = vmatprep.subr.mxu0 0.0
  %499 = vmatpush1.msra.mxu0 0.0
  %500 = vmatprep.subr.mxu0 0.0
  %501 = vmatpush1.msra.mxu0 0.0
  %502 = vmatprep.subr.mxu0 0.0
  %503 = vmatpush1.msra.mxu0 0.0
  %504 = vmatprep.subr.mxu0 0.0
  %505 = vmatpush1.msra.mxu0 0.0
  %506 = vmatprep.subr.mxu0 0.0
  %507 = vmatpush1.msra.mxu0 0.0
  %508 = vmatprep.subr.mxu0 0.0
  %509 = vmatpush1.msra.mxu0 0.0
  %510 = vmatprep.subr.mxu0 0.0
  %511 = vmatpush1.msra.mxu0 0.0
  %512 = vmatprep.subr.mxu0 0.0
  %513 = vmatpush1.msra.mxu0 0.0
  %514 = vmatprep.subr.mxu0 0.0
  %515 = vmatpush1.msra.mxu0 0.0
  %516 = vmatprep.subr.mxu0 0.0
  %517 = vmatpush1.msra.mxu0 0.0
  %518 = vmatprep.mubr.f32.mxu0 0.0
  %519 = vmatmul.mubr.f32.gmra.mrb[0].mxu0 %v117
  %v520 = vpop.f32.mrb[0].mxu0
  %v521 = vadd.f32 %v448, %v520
  %v522 = vpop.f32.mrb[0].mxu0
  %523 = vdwg.mxu0
  %s524 = scalar_lea.vmem %s4, 1
  %v525 = vld [vmem:[%s524] sm:$0x1]
  %v527 = vlaneseq
  %v528 = vshrl.u32 %v527, 7
  %v529 = vsub.s32 0, %v528
  %v530 = vrot.slane %v525, %v529
  %v532 = vadd.f32 %v521, %v530
  %v533 = vmax.f32 %v532, 0.0
  %s534 = scalar_lea.vmem %s5, 32
  %v535 = vld [vmem:[%s534] sm:$0xff]
  %v536 = vld [vmem:[%s534 + $0x8] sm:$0xff]
  %v537 = vld [vmem:[%s534 + $0x10] sm:$0xff]
  %v538 = vld [vmem:[%s534 + $0x18] sm:$0xff]
  %s539 = scalar_lea.vmem %s6, 1
  %v540 = vld [vmem:[%s539] sm:$0x1]
  %v542 = vlaneseq
  %v543 = vshrl.u32 %v542, 7
  %v544 = vsub.s32 0, %v543
  %v545 = vrot.slane %v540, %v544
  %v548 = vsel %vm212, %v533, 0
  %550 = vmatprep.subr.mxu0 0.0
  %551 = vmatpush1.msra.mxu0 %v535
  %552 = vmatprep.subr.mxu0 0.0
  %553 = vmatpush1.msra.mxu0 %v536
  %554 = vmatprep.subr.mxu0 0.0
  %555 = vmatpush1.msra.mxu0 %v537
  %556 = vmatprep.subr.mxu0 0.0
  %557 = vmatpush1.msra.mxu0 %v538
  %558 = vmatprep.subr.mxu0 0.0
  %559 = vmatpush1.msra.mxu0 0.0
  %560 = vmatprep.subr.mxu0 0.0
  %561 = vmatpush1.msra.mxu0 0.0
  %562 = vmatprep.subr.mxu0 0.0
  %563 = vmatpush1.msra.mxu0 0.0
  %564 = vmatprep.subr.mxu0 0.0
  %565 = vmatpush1.msra.mxu0 0.0
  %566 = vmatprep.subr.mxu0 0.0
  %567 = vmatpush1.msra.mxu0 0.0
  %568 = vmatprep.subr.mxu0 0.0
  %569 = vmatpush1.msra.mxu0 0.0
  %570 = vmatprep.subr.mxu0 0.0
  %571 = vmatpush1.msra.mxu0 0.0
  %572 = vmatprep.subr.mxu0 0.0
  %573 = vmatpush1.msra.mxu0 0.0
  %574 = vmatprep.subr.mxu0 0.0
  %575 = vmatpush1.msra.mxu0 0.0
  %576 = vmatprep.subr.mxu0 0.0
  %577 = vmatpush1.msra.mxu0 0.0
  %578 = vmatprep.subr.mxu0 0.0
  %579 = vmatpush1.msra.mxu0 0.0
  %580 = vmatprep.subr.mxu0 0.0
  %581 = vmatpush1.msra.mxu0 0.0
  %582 = vmatprep.subr.mxu0 0.0
  %583 = vmatpush1.msra.mxu0 0.0
  %584 = vmatprep.subr.mxu0 0.0
  %585 = vmatpush1.msra.mxu0 0.0
  %586 = vmatprep.subr.mxu0 0.0
  %587 = vmatpush1.msra.mxu0 0.0
  %588 = vmatprep.subr.mxu0 0.0
  %589 = vmatpush1.msra.mxu0 0.0
  %590 = vmatprep.subr.mxu0 0.0
  %591 = vmatpush1.msra.mxu0 0.0
  %592 = vmatprep.subr.mxu0 0.0
  %593 = vmatpush1.msra.mxu0 0.0
  %594 = vmatprep.subr.mxu0 0.0
  %595 = vmatpush1.msra.mxu0 0.0
  %596 = vmatprep.subr.mxu0 0.0
  %597 = vmatpush1.msra.mxu0 0.0
  %598 = vmatprep.subr.mxu0 0.0
  %599 = vmatpush1.msra.mxu0 0.0
  %600 = vmatprep.subr.mxu0 0.0
  %601 = vmatpush1.msra.mxu0 0.0
  %602 = vmatprep.subr.mxu0 0.0
  %603 = vmatpush1.msra.mxu0 0.0
  %604 = vmatprep.subr.mxu0 0.0
  %605 = vmatpush1.msra.mxu0 0.0
  %606 = vmatprep.subr.mxu0 0.0
  %607 = vmatpush1.msra.mxu0 0.0
  %608 = vmatprep.subr.mxu0 0.0
  %609 = vmatpush1.msra.mxu0 0.0
  %610 = vmatprep.subr.mxu0 0.0
  %611 = vmatpush1.msra.mxu0 0.0
  %612 = vmatprep.subr.mxu0 0.0
  %613 = vmatpush1.msra.mxu0 0.0
  %614 = vmatprep.mubr.f32.mxu0 0.0
  %615 = vmatmul.mubr.f32.gmra.mrb[0].mxu0 %v548
  %v616 = vpop.f32.mrb[0].mxu0
  %v617 = vadd.f32 %v545, %v616
  %v618 = vpop.f32.mrb[0].mxu0
  %619 = vdwg.mxu0
  %v620 = vmax.f32 %v617, 0.0
  %s621 = scalar_lea.vmem %s7, 32
  %v622 = vld [vmem:[%s621] sm:$0xff]
  %v623 = vld [vmem:[%s621 + $0x8] sm:$0xff]
  %v624 = vld [vmem:[%s621 + $0x10] sm:$0xff]
  %v625 = vld [vmem:[%s621 + $0x18] sm:$0xff]
  %s626 = scalar_lea.vmem %s8, 1
  %v627 = vld [vmem:[%s626] sm:$0x1]
  %v629 = vlaneseq
  %v630 = vshrl.u32 %v629, 7
  %v631 = vsub.s32 0, %v630
  %v632 = vrot.slane %v627, %v631
  %v635 = vsel %vm212, %v620, 0
  %637 = vmatprep.subr.mxu0 0.0
  %638 = vmatpush1.msra.mxu0 %v622
  %639 = vmatprep.subr.mxu0 0.0
  %640 = vmatpush1.msra.mxu0 %v623
  %641 = vmatprep.subr.mxu0 0.0
  %642 = vmatpush1.msra.mxu0 %v624
  %643 = vmatprep.subr.mxu0 0.0
  %644 = vmatpush1.msra.mxu0 %v625
  %645 = vmatprep.subr.mxu0 0.0
  %646 = vmatpush1.msra.mxu0 0.0
  %647 = vmatprep.subr.mxu0 0.0
  %648 = vmatpush1.msra.mxu0 0.0
  %649 = vmatprep.subr.mxu0 0.0
  %650 = vmatpush1.msra.mxu0 0.0
  %651 = vmatprep.subr.mxu0 0.0
  %652 = vmatpush1.msra.mxu0 0.0
  %653 = vmatprep.subr.mxu0 0.0
  %654 = vmatpush1.msra.mxu0 0.0
  %655 = vmatprep.subr.mxu0 0.0
  %656 = vmatpush1.msra.mxu0 0.0
  %657 = vmatprep.subr.mxu0 0.0
  %658 = vmatpush1.msra.mxu0 0.0
  %659 = vmatprep.subr.mxu0 0.0
  %660 = vmatpush1.msra.mxu0 0.0
  %661 = vmatprep.subr.mxu0 0.0
  %662 = vmatpush1.msra.mxu0 0.0
  %663 = vmatprep.subr.mxu0 0.0
  %664 = vmatpush1.msra.mxu0 0.0
  %665 = vmatprep.subr.mxu0 0.0
  %666 = vmatpush1.msra.mxu0 0.0
  %667 = vmatprep.subr.mxu0 0.0
  %668 = vmatpush1.msra.mxu0 0.0
  %669 = vmatprep.subr.mxu0 0.0
  %670 = vmatpush1.msra.mxu0 0.0
  %671 = vmatprep.subr.mxu0 0.0
  %672 = vmatpush1.msra.mxu0 0.0
  %673 = vmatprep.subr.mxu0 0.0
  %674 = vmatpush1.msra.mxu0 0.0
  %675 = vmatprep.subr.mxu0 0.0
  %676 = vmatpush1.msra.mxu0 0.0
  %677 = vmatprep.subr.mxu0 0.0
  %678 = vmatpush1.msra.mxu0 0.0
  %679 = vmatprep.subr.mxu0 0.0
  %680 = vmatpush1.msra.mxu0 0.0
  %681 = vmatprep.subr.mxu0 0.0
  %682 = vmatpush1.msra.mxu0 0.0
  %683 = vmatprep.subr.mxu0 0.0
  %684 = vmatpush1.msra.mxu0 0.0
  %685 = vmatprep.subr.mxu0 0.0
  %686 = vmatpush1.msra.mxu0 0.0
  %687 = vmatprep.subr.mxu0 0.0
  %688 = vmatpush1.msra.mxu0 0.0
  %689 = vmatprep.subr.mxu0 0.0
  %690 = vmatpush1.msra.mxu0 0.0
  %691 = vmatprep.subr.mxu0 0.0
  %692 = vmatpush1.msra.mxu0 0.0
  %693 = vmatprep.subr.mxu0 0.0
  %694 = vmatpush1.msra.mxu0 0.0
  %695 = vmatprep.subr.mxu0 0.0
  %696 = vmatpush1.msra.mxu0 0.0
  %697 = vmatprep.subr.mxu0 0.0
  %698 = vmatpush1.msra.mxu0 0.0
  %699 = vmatprep.subr.mxu0 0.0
  %700 = vmatpush1.msra.mxu0 0.0
  %701 = vmatprep.mubr.f32.mxu0 0.0
  %702 = vmatmul.mubr.f32.gmra.mrb[0].mxu0 %v635
  %v703 = vpop.f32.mrb[0].mxu0
  %v704 = vadd.f32 %v632, %v703
  %v705 = vpop.f32.mrb[0].mxu0
  %706 = vdwg.mxu0
  %708 = vrot.lane.b32.xlu0 %v704, 1
  %v709 = vpop.permute.xlu0 %708
  %vm711 = vcmask 15368
  %712 = vst.msk [vmem:[%s9] sm:$0xff] %vm711, %v709
  // Predicated region
  $region38: #{tpu_custom_call.1} parent=0 // pred_check
    _
  $region39: #{tpu_custom_call.1} parent=0 // pred_check_branch
    %714 = sbr.rel (0) target = $region41
  $region40: #{tpu_custom_call.1} parent=0 // pred_region
    _
  $region41: #{tpu_custom_call.1} parent=0 // pred_fallthru
    _
  // Predicated region
  $region42: #{tpu_custom_call.1} parent=0 // pred_check
    _
  $region43: #{tpu_custom_call.1} parent=0 // pred_check_branch
    %716 = sbr.rel (0) target = $region45
  $region44: #{tpu_custom_call.1} parent=0 // pred_region
    _
  $region45: #{tpu_custom_call.1} parent=0 // pred_fallthru
    _

</llo_original>
